<compile_context>
chip_gen: v5e
topology: v5e:2x2
jax: 0.10.0
libtpu: 0.0.40
codegen_flags: <defaults>
</compile_context>

<pallas_src>
import functools

import numpy as np
import jax
import jax.numpy as jnp
from jax.experimental import pallas as pl
from jax.experimental.pallas import tpu as pltpu


def symmetric_net_kernel(x_ref, w1_ref, b1_ref, w2_ref, b2_ref,
                         w3_ref, b3_ref, m_ref, q_ref):
    neg_slope = 0.01  # nn.LeakyReLU default

    x = x_ref[...]  # bf16 tile (TILE_B, in_dim)

    # Layer 1: Linear + LeakyReLU (bf16 MXU operands, f32 accumulate)
    h = jnp.dot(x, w1_ref[...], preferred_element_type=jnp.float32) + b1_ref[...]
    h = jnp.where(h >= 0, h, neg_slope * h)

    # Layer 2: Linear + LeakyReLU
    h = jnp.dot(h.astype(jnp.bfloat16), w2_ref[...],
                preferred_element_type=jnp.float32) + b2_ref[...]
    h = jnp.where(h >= 0, h, neg_slope * h)

    # Layer 3: Linear (no activation in Sequential), then Tanh in forward()
    l = jnp.dot(h.astype(jnp.bfloat16), w3_ref[...],
                preferred_element_type=jnp.float32) + b3_ref[...]
    l = jnp.tanh(l)

    # fill_tril + (L + L^T) as a matmul with the (lane-padded) scatter matrix.
    q_ref[...] = jnp.dot(l.astype(jnp.bfloat16), m_ref[...],
                         preferred_element_type=jnp.float32)


def _round_up(n, m):
    return ((n + m - 1) // m) * m


@functools.cache
def make_symmetric_scatter(out_dim, pad_to=128):
    """M maps the chol vector (tril row-major order) to flattened Q = L + L^T.

    Columns are zero-padded to a multiple of `pad_to` so the kernel output is
    lane-dense (unmasked stores)."""
    rows, cols = np.tril_indices(out_dim)
    chol_dim = rows.shape[0]
    pad_n = _round_up(out_dim * out_dim, pad_to)
    M = np.zeros((chol_dim, pad_n), dtype=np.float32)
    for k, (i, j) in enumerate(zip(rows, cols)):
        M[k, i * out_dim + j] += 1.0  # L[i, j]
        M[k, j * out_dim + i] += 1.0  # L^T[i, j] (diagonal doubled, as in L + L^T)
    return M


@functools.cache
def _scatter_device(out_dim, pad_to=128):
    # Entries are {0,1,2}: exactly representable in bf16.
    return jnp.asarray(make_symmetric_scatter(out_dim, pad_to), dtype=jnp.bfloat16)


def init_params(key, in_dim, out_dim, n_layers=None):
    """Deterministic init matching nn.init.uniform_(param, -1/in_feat, 1/in_feat)."""
    out_dim_chol = int(out_dim + out_dim * (out_dim - 1) / 2)
    if n_layers is None:
        n_layers = [20, 20, out_dim_chol]
    params = []
    in_feat = in_dim
    for out_feat in n_layers:
        key, kw, kb = jax.random.split(key, 3)
        bound = 1.0 / in_feat
        W = jax.random.uniform(kw, (in_feat, out_feat), jnp.float32, -bound, bound)
        b = jax.random.uniform(kb, (1, out_feat), jnp.float32, -bound, bound)
        params.append((W, b))
        in_feat = out_feat
    return params


def symmetric_net_forward(x, params, out_dim, tile_b=4096):
    (w1, b1), (w2, b2), (w3, b3) = params
    B, in_dim = x.shape
    n_out = out_dim * out_dim
    pad_n = _round_up(n_out, 128)
    M = _scatter_device(out_dim)  # cached: built & transferred once per out_dim

    # Large batch tile amortizes the ~0.35us/step overhead; sized well inside
    # v7x's 32 MiB default-scoped VMEM even double-buffered
    # (TILE_B=4096 -> ~2 MiB of f32 output per buffer).
    tile_b = min(tile_b, B)
    grid = (pl.cdiv(B, tile_b),)

    # bf16 MXU operands; f32 accumulation happens inside the kernel.
    x_bf = x.astype(jnp.bfloat16)
    w1b = w1.astype(jnp.bfloat16)
    w2b = w2.astype(jnp.bfloat16)
    w3b = w3.astype(jnp.bfloat16)

    const2d = lambda i: (0, 0)  # weights / biases / M: resident across grid steps

    q_pad = pl.pallas_call(
        symmetric_net_kernel,
        out_shape=jax.ShapeDtypeStruct((B, pad_n), jnp.float32),
        grid=grid,
        in_specs=[
            pl.BlockSpec((tile_b, in_dim), lambda i: (i, 0)),   # x: streamed
            pl.BlockSpec(w1b.shape, const2d),                   # w1
            pl.BlockSpec(b1.shape, const2d),                    # b1
            pl.BlockSpec(w2b.shape, const2d),                   # w2
            pl.BlockSpec(b2.shape, const2d),                    # b2
            pl.BlockSpec(w3b.shape, const2d),                   # w3
            pl.BlockSpec(b3.shape, const2d),                    # b3
            pl.BlockSpec(M.shape, const2d),                     # M (lane-padded)
        ],
        out_specs=pl.BlockSpec((tile_b, pad_n), lambda i: (i, 0)),
        compiler_params=pltpu.CompilerParams(
            dimension_semantics=("parallel",)),
    )(x_bf, w1b, b1, w2b, b2, w3b, b3, M)

    return q_pad[:, :n_out].reshape(B, out_dim, out_dim)


def reference_forward(x, params, out_dim):
    """Pure-JAX f32 reference for validation."""
    (w1, b1), (w2, b2), (w3, b3) = params
    h = x @ w1 + b1
    h = jnp.where(h >= 0, h, 0.01 * h)
    h = h @ w2 + b2
    h = jnp.where(h >= 0, h, 0.01 * h)
    l = jnp.tanh(h @ w3 + b3)
    rows, cols = np.tril_indices(out_dim)
    L = jnp.zeros((x.shape[0], out_dim, out_dim), jnp.float32)
    L = L.at[:, rows, cols].set(l)
    return L + jnp.swapaxes(L, -1, -2)


if __name__ == "__main__":
    in_dim = 4
    out_dim = 5          # side size of the symmetric matrix
    batch = 8

    key = jax.random.PRNGKey(0)
    key, kx = jax.random.split(key)
    x = jax.random.normal(kx, (batch, in_dim), jnp.float32)

    params = init_params(key, in_dim, out_dim)

    q = symmetric_net_forward(x, params, out_dim)
    q = jax.block_until_ready(q)

    q_ref = reference_forward(x, params, out_dim)
    # bf16 MXU operands with f32 accumulation: loosen tolerance accordingly.
    np.testing.assert_allclose(np.asarray(q), np.asarray(q_ref), rtol=2e-2, atol=2e-2)

    # Symmetry sanity check (exact by construction of M; tiny tolerance for safety).
    np.testing.assert_allclose(np.asarray(q), np.asarray(jnp.swapaxes(q, -1, -2)),
                               rtol=1e-6, atol=1e-6)

    print("KERNEL_OK")
</pallas_src>

<mosaic_0001>
module attributes {stable_mosaic.version = 11 : i64} {
  func.func @symmetric_net_kernel(%arg0: i32, %arg1: memref<8x4xbf16, #tpu.memory_space<vmem>>, %arg2: memref<4x20xbf16, #tpu.memory_space<vmem>>, %arg3: memref<1x20xf32, #tpu.memory_space<vmem>>, %arg4: memref<20x20xbf16, #tpu.memory_space<vmem>>, %arg5: memref<1x20xf32, #tpu.memory_space<vmem>>, %arg6: memref<20x15xbf16, #tpu.memory_space<vmem>>, %arg7: memref<1x15xf32, #tpu.memory_space<vmem>>, %arg8: memref<15x128xbf16, #tpu.memory_space<vmem>>, %arg9: memref<8x128xf32, #tpu.memory_space<vmem>>) attributes {dimension_semantics = [#tpu.dimension_semantics<parallel>], iteration_bounds = array<i64: 1>, scalar_prefetch = 0 : i64, scratch_operands = 0 : i64, tpu.core_type = #tpu.core_type<tc>, window_params = [{transform_indices = @transform_0, window_bounds = array<i64: 8, 4>}, {pipeline_mode = #tpu.pipeline_mode<synchronous>, transform_indices = @transform_1, window_bounds = array<i64: 4, 20>}, {pipeline_mode = #tpu.pipeline_mode<synchronous>, transform_indices = @transform_2, window_bounds = array<i64: 1, 20>}, {pipeline_mode = #tpu.pipeline_mode<synchronous>, transform_indices = @transform_3, window_bounds = array<i64: 20, 20>}, {pipeline_mode = #tpu.pipeline_mode<synchronous>, transform_indices = @transform_4, window_bounds = array<i64: 1, 20>}, {pipeline_mode = #tpu.pipeline_mode<synchronous>, transform_indices = @transform_5, window_bounds = array<i64: 20, 15>}, {pipeline_mode = #tpu.pipeline_mode<synchronous>, transform_indices = @transform_6, window_bounds = array<i64: 1, 15>}, {pipeline_mode = #tpu.pipeline_mode<synchronous>, transform_indices = @transform_7, window_bounds = array<i64: 15, 128>}, {transform_indices = @transform_8, window_bounds = array<i64: 8, 128>}]} {
    %c0 = arith.constant 0 : index
    %c0_0 = arith.constant 0 : index
    %0 = vector.load %arg1[%c0, %c0_0] : memref<8x4xbf16, #tpu.memory_space<vmem>>, vector<8x4xbf16>
    %c0_1 = arith.constant 0 : index
    %c0_2 = arith.constant 0 : index
    %1 = vector.load %arg2[%c0_1, %c0_2] : memref<4x20xbf16, #tpu.memory_space<vmem>>, vector<4x20xbf16>
    %cst = arith.constant dense<0.000000e+00> : vector<8x20xf32>
    %2 = tpu.matmul %0, %1, %cst {dimension_numbers = #tpu.dot_dimension_numbers<[1], [0], [0], [1], [0, 0, 1, 1], [], []>} : vector<8x4xbf16>, vector<4x20xbf16>, vector<8x20xf32> -> vector<8x20xf32>
    %c0_3 = arith.constant 0 : index
    %c0_4 = arith.constant 0 : index
    %3 = vector.load %arg3[%c0_3, %c0_4] : memref<1x20xf32, #tpu.memory_space<vmem>>, vector<1x20xf32>
    %4 = vector.broadcast %3 : vector<1x20xf32> to vector<8x20xf32>
    %5 = arith.addf %2, %4 : vector<8x20xf32>
    %cst_5 = arith.constant 0.000000e+00 : f32
    %6 = vector.broadcast %cst_5 : f32 to vector<8x20xf32>
    %7 = arith.cmpf oge, %5, %6 : vector<8x20xf32>
    %cst_6 = arith.constant 0.00999999977 : f32
    %8 = vector.broadcast %cst_6 : f32 to vector<8x20xf32>
    %9 = arith.mulf %8, %5 : vector<8x20xf32>
    %10 = arith.select %7, %5, %9 : vector<8x20xi1>, vector<8x20xf32>
    %11 = arith.truncf %10 : vector<8x20xf32> to vector<8x20xbf16>
    %c0_7 = arith.constant 0 : index
    %c0_8 = arith.constant 0 : index
    %12 = vector.load %arg4[%c0_7, %c0_8] : memref<20x20xbf16, #tpu.memory_space<vmem>>, vector<20x20xbf16>
    %cst_9 = arith.constant dense<0.000000e+00> : vector<8x20xf32>
    %13 = tpu.matmul %11, %12, %cst_9 {dimension_numbers = #tpu.dot_dimension_numbers<[1], [0], [0], [1], [0, 0, 1, 1], [], []>} : vector<8x20xbf16>, vector<20x20xbf16>, vector<8x20xf32> -> vector<8x20xf32>
    %c0_10 = arith.constant 0 : index
    %c0_11 = arith.constant 0 : index
    %14 = vector.load %arg5[%c0_10, %c0_11] : memref<1x20xf32, #tpu.memory_space<vmem>>, vector<1x20xf32>
    %15 = vector.broadcast %14 : vector<1x20xf32> to vector<8x20xf32>
    %16 = arith.addf %13, %15 : vector<8x20xf32>
    %cst_12 = arith.constant 0.000000e+00 : f32
    %17 = vector.broadcast %cst_12 : f32 to vector<8x20xf32>
    %18 = arith.cmpf oge, %16, %17 : vector<8x20xf32>
    %cst_13 = arith.constant 0.00999999977 : f32
    %19 = vector.broadcast %cst_13 : f32 to vector<8x20xf32>
    %20 = arith.mulf %19, %16 : vector<8x20xf32>
    %21 = arith.select %18, %16, %20 : vector<8x20xi1>, vector<8x20xf32>
    %22 = arith.truncf %21 : vector<8x20xf32> to vector<8x20xbf16>
    %c0_14 = arith.constant 0 : index
    %c0_15 = arith.constant 0 : index
    %23 = vector.load %arg6[%c0_14, %c0_15] : memref<20x15xbf16, #tpu.memory_space<vmem>>, vector<20x15xbf16>
    %cst_16 = arith.constant dense<0.000000e+00> : vector<8x15xf32>
    %24 = tpu.matmul %22, %23, %cst_16 {dimension_numbers = #tpu.dot_dimension_numbers<[1], [0], [0], [1], [0, 0, 1, 1], [], []>} : vector<8x20xbf16>, vector<20x15xbf16>, vector<8x15xf32> -> vector<8x15xf32>
    %c0_17 = arith.constant 0 : index
    %c0_18 = arith.constant 0 : index
    %25 = vector.load %arg7[%c0_17, %c0_18] : memref<1x15xf32, #tpu.memory_space<vmem>>, vector<1x15xf32>
    %26 = vector.broadcast %25 : vector<1x15xf32> to vector<8x15xf32>
    %27 = arith.addf %24, %26 : vector<8x15xf32>
    %28 = math.tanh %27 : vector<8x15xf32>
    %29 = arith.truncf %28 : vector<8x15xf32> to vector<8x15xbf16>
    %c0_19 = arith.constant 0 : index
    %c0_20 = arith.constant 0 : index
    %30 = vector.load %arg8[%c0_19, %c0_20] : memref<15x128xbf16, #tpu.memory_space<vmem>>, vector<15x128xbf16>
    %cst_21 = arith.constant dense<0.000000e+00> : vector<8x128xf32>
    %31 = tpu.matmul %29, %30, %cst_21 {dimension_numbers = #tpu.dot_dimension_numbers<[1], [0], [0], [1], [0, 0, 1, 1], [], []>} : vector<8x15xbf16>, vector<15x128xbf16>, vector<8x128xf32> -> vector<8x128xf32>
    %c0_22 = arith.constant 0 : index
    %c0_23 = arith.constant 0 : index
    %32 = vector.load %arg9[%c0_22, %c0_23] : memref<8x128xf32, #tpu.memory_space<vmem>>, vector<8x128xf32>
    tpu.vector_store %arg9[%c0_22, %c0_23], %31 {strides = array<i32>} : memref<8x128xf32, #tpu.memory_space<vmem>>, vector<8x128xf32>,
    return
  }
  func.func @transform_0(%arg0: i32) -> (i32, i32) {
    %c0_i32 = arith.constant 0 : i32
    %c0_i32_0 = arith.constant 0 : i32
    return %arg0, %c0_i32 : i32, i32
  }
  func.func @transform_1(%arg0: i32) -> (i32, i32) {
    %c0_i32 = arith.constant 0 : i32
    %c0_i32_0 = arith.constant 0 : i32
    %c0_i32_1 = arith.constant 0 : i32
    return %c0_i32, %c0_i32_0 : i32, i32
  }
  func.func @transform_2(%arg0: i32) -> (i32, i32) {
    %c0_i32 = arith.constant 0 : i32
    %c0_i32_0 = arith.constant 0 : i32
    %c0_i32_1 = arith.constant 0 : i32
    return %c0_i32, %c0_i32_0 : i32, i32
  }
  func.func @transform_3(%arg0: i32) -> (i32, i32) {
    %c0_i32 = arith.constant 0 : i32
    %c0_i32_0 = arith.constant 0 : i32
    %c0_i32_1 = arith.constant 0 : i32
    return %c0_i32, %c0_i32_0 : i32, i32
  }
  func.func @transform_4(%arg0: i32) -> (i32, i32) {
    %c0_i32 = arith.constant 0 : i32
    %c0_i32_0 = arith.constant 0 : i32
    %c0_i32_1 = arith.constant 0 : i32
    return %c0_i32, %c0_i32_0 : i32, i32
  }
  func.func @transform_5(%arg0: i32) -> (i32, i32) {
    %c0_i32 = arith.constant 0 : i32
    %c0_i32_0 = arith.constant 0 : i32
    %c0_i32_1 = arith.constant 0 : i32
    return %c0_i32, %c0_i32_0 : i32, i32
  }
  func.func @transform_6(%arg0: i32) -> (i32, i32) {
    %c0_i32 = arith.constant 0 : i32
    %c0_i32_0 = arith.constant 0 : i32
    %c0_i32_1 = arith.constant 0 : i32
    return %c0_i32, %c0_i32_0 : i32, i32
  }
  func.func @transform_7(%arg0: i32) -> (i32, i32) {
    %c0_i32 = arith.constant 0 : i32
    %c0_i32_0 = arith.constant 0 : i32
    %c0_i32_1 = arith.constant 0 : i32
    return %c0_i32, %c0_i32_0 : i32, i32
  }
  func.func @transform_8(%arg0: i32) -> (i32, i32) {
    %c0_i32 = arith.constant 0 : i32
    %c0_i32_0 = arith.constant 0 : i32
    return %arg0, %c0_i32 : i32, i32
  }
}

</mosaic_0001>

<llo_original>
// kernel: tpu_custom_call.1
$region0: #{tpu_custom_call.1}
  #allocation0 [shape = 'u32[]', space=smem, size = 0x4, offset = 0x4, fixed_abs, tag = 'smem constant byte address 0x4 - core index']
  #allocation1 [shape = 'u32[72,128]{1,0:T(1,128)}', space=vmem, size = 0x9000, scoped, tag = 'internal scratch']
  %s0 = inlined_call_operand.vmem [shape: bf16[8,4], index: 0, kind: input, shape index: {}]
  %s1 = inlined_call_operand.vmem [shape: bf16[4,20], index: 1, kind: input, shape index: {}]
  %s2 = inlined_call_operand.hbm [shape: f32[1,20], index: 2, kind: input, shape index: {}]
  %s3 = inlined_call_operand.vmem [shape: bf16[20,20], index: 3, kind: input, shape index: {}]
  %s4 = inlined_call_operand.hbm [shape: f32[1,20], index: 4, kind: input, shape index: {}]
  %s5 = inlined_call_operand.vmem [shape: bf16[20,15], index: 5, kind: input, shape index: {}]
  %s6 = inlined_call_operand.vmem [shape: f32[1,15], index: 6, kind: input, shape index: {}]
  %s7 = inlined_call_operand.vmem [shape: bf16[15,128], index: 7, kind: input, shape index: {}]
  %s8 = inlined_call_operand.hbm [shape: f32[8,128], index: 8, kind: output, shape index: {}]
  %s9 = sld [smem:[#allocation0]]
  $region50: #{tpu_custom_call.1} parent=0
    _
  %s11 = ssub.s32 1, %s9
  %s12 = scalar_select 0, %s11, %s9
  $region1: #{tpu_custom_call.1} parent=0
    #allocation2 [shape = 'u8[512]{0}', space=vmem, size = 0x400, scoped, tag = 'input window, operand 2, single buffered']
    #allocation3 [shape = 's32[1]{0}', space=sflag, size = 0x4, scoped, tag = 'scoped memory for tpu_custom_call.1']
    #allocation4 [shape = 's32[1]{0}', space=sflag, size = 0x4, scoped, tag = 'scoped memory for tpu_custom_call.1']
    #allocation5 [shape = 'u8[512]{0}', space=vmem, size = 0x400, scoped, tag = 'input window, operand 4, single buffered']
    #allocation6 [shape = 's32[1]{0}', space=sflag, size = 0x4, scoped, tag = 'scoped memory for tpu_custom_call.1']
    #allocation7 [shape = 'u8[4096]{0}', space=vmem, size = 0x1000, scoped, tag = 'output window, operand 0, single buffered']
    %13 = vsyncpa [#allocation3], 0
    %14 = vsyncpa [#allocation6], 0
    %15 = vsyncpa [#allocation4], 0
    // Predicated region
    $region2: #{tpu_custom_call.1} parent=1 // pred_check
      _
    $region3: #{tpu_custom_call.1} parent=1 // pred_check_branch
      %17 = sbr.rel (0) target = $region5
    $region4: #{tpu_custom_call.1} parent=1 // pred_region
      _
    $region5: #{tpu_custom_call.1} parent=1 // pred_fallthru
      _
    // Predicated region
    $region6: #{tpu_custom_call.1} parent=1 // pred_check
      _
    $region7: #{tpu_custom_call.1} parent=1 // pred_check_branch
      %19 = sbr.rel (0) target = $region9
    $region8: #{tpu_custom_call.1} parent=1 // pred_region
      _
    $region9: #{tpu_custom_call.1} parent=1 // pred_fallthru
      _
    // Predicated region
    $region10: #{tpu_custom_call.1} parent=1 // pred_check
      _
    $region11: #{tpu_custom_call.1} parent=1 // pred_check_branch
      %21 = sbr.rel (0) target = $region13
    $region12: #{tpu_custom_call.1} parent=1 // pred_region
      %23 = vsyncadd [#allocation3], 0
      %s25 = sshll.u32 %s2, 4
      %s26 = int_to_ptr.hbm [resolvable:$true] %s25
      %s27 = sshll.u32 [#allocation2], 4
      %s28 = int_to_ptr.vmem [resolvable:$true] %s27
      %30 = dma.hbm_to_vmem [thread:$0]  %s26, 16, %s28, [#allocation3]
    $region13: #{tpu_custom_call.1} parent=1 // pred_fallthru
      _
    // Predicated region
    $region14: #{tpu_custom_call.1} parent=1 // pred_check
      _
    $region15: #{tpu_custom_call.1} parent=1 // pred_check_branch
      %32 = sbr.rel (0) target = $region17
    $region16: #{tpu_custom_call.1} parent=1 // pred_region
      _
    $region17: #{tpu_custom_call.1} parent=1 // pred_fallthru
      _
    // Predicated region
    $region18: #{tpu_custom_call.1} parent=1 // pred_check
      _
    $region19: #{tpu_custom_call.1} parent=1 // pred_check_branch
      %34 = sbr.rel (0) target = $region21
    $region20: #{tpu_custom_call.1} parent=1 // pred_region
      %36 = vsyncadd [#allocation6], 0
      %s38 = sshll.u32 %s4, 4
      %s39 = int_to_ptr.hbm [resolvable:$true] %s38
      %s40 = sshll.u32 [#allocation5], 4
      %s41 = int_to_ptr.vmem [resolvable:$true] %s40
      %43 = dma.hbm_to_vmem [thread:$0]  %s39, 16, %s41, [#allocation6]
    $region21: #{tpu_custom_call.1} parent=1 // pred_fallthru
      _
    // Predicated region
    $region22: #{tpu_custom_call.1} parent=1 // pred_check
      _
    $region23: #{tpu_custom_call.1} parent=1 // pred_check_branch
      %45 = sbr.rel (0) target = $region25
    $region24: #{tpu_custom_call.1} parent=1 // pred_region
      _
    $region25: #{tpu_custom_call.1} parent=1 // pred_fallthru
      _
    // Predicated region
    $region26: #{tpu_custom_call.1} parent=1 // pred_check
      _
    $region27: #{tpu_custom_call.1} parent=1 // pred_check_branch
      %47 = sbr.rel (0) target = $region29
    $region28: #{tpu_custom_call.1} parent=1 // pred_region
      _
    $region29: #{tpu_custom_call.1} parent=1 // pred_fallthru
      _
    // Predicated region
    $region30: #{tpu_custom_call.1} parent=1 // pred_check
      _
    $region31: #{tpu_custom_call.1} parent=1 // pred_check_branch
      %49 = sbr.rel (0) target = $region33
    $region32: #{tpu_custom_call.1} parent=1 // pred_region
      _
    $region33: #{tpu_custom_call.1} parent=1 // pred_fallthru
      _
    // Predicated region
    $region34: #{tpu_custom_call.1} parent=1 // pred_check
      _
    $region35: #{tpu_custom_call.1} parent=1 // pred_check_branch
      %51 = sbr.rel (0) target = $region37
    $region36: #{tpu_custom_call.1} parent=1 // pred_region
      %53 = dma.done [#allocation3], 16
    $region37: #{tpu_custom_call.1} parent=1 // pred_fallthru
      _
    // Predicated region
    $region38: #{tpu_custom_call.1} parent=1 // pred_check
      _
    $region39: #{tpu_custom_call.1} parent=1 // pred_check_branch
      %55 = sbr.rel (0) target = $region41
    $region40: #{tpu_custom_call.1} parent=1 // pred_region
      %57 = dma.done [#allocation6], 16
    $region41: #{tpu_custom_call.1} parent=1 // pred_fallthru
      _
    %v59 = vld [vmem:[%s0] sm:$0xf]
    %v60 = vld [vmem:[%s1] sm:$0x3]
    %v61 = vld [vmem:[#allocation2] sm:$0x1]
    %v63 = vperm.slane %v61, 0
    %vm65 = vcmask 31744
    %v67 = vsel %vm65, %v59, 0
    %vm69 = vcmask 1041408
    %v71 = vsel %vm69, %v60, 0
    %73 = vmatpush.bf16.msra.mxu0 0
    %74 = vmatpush.bf16.msra.mxu0 0
    %75 = vmatpush.bf16.msra.mxu0 0
    %76 = vmatpush.bf16.msra.mxu0 0
    %77 = vmatpush.bf16.msra.mxu0 0
    %78 = vmatpush.bf16.msra.mxu0 0
    %79 = vmatpush.bf16.msra.mxu0 0
    %80 = vmatpush.bf16.msra.mxu0 %v71
    %81 = vmatmul.bf16.gmra.mxu0 %v67
    %v82 = vpop.f32.mrf.mxu0
    %v83 = vadd.f32 %v63, %v82
    %v84 = vpop.f32.mrf.mxu0
    %85 = vdwg.mxu0
    %vm86 = vcmp.ge.f32.partialorder %v83, 0.0
    %v87 = vmul.f32 %v83, 0.01
    %v88 = vsel %vm86, %v83, %v87
    %v89 = vpack.c.bf16 %v88, %v88
    %v90 = vld [vmem:[%s3] sm:$0xf]
    %v91 = vld [vmem:[%s3 + $0x4] sm:$0xf]
    %v92 = vld [vmem:[%s3 + $0x8] sm:$0x3]
    %v93 = vld [vmem:[#allocation5] sm:$0x1]
    %v95 = vperm.slane %v93, 0
    %v100 = vunpack.c.l.b16 %v90
    %v101 = vunpack.c.l.b16 %v91
    %v102 = vunpack.c.l.b16 %v92
    %v103 = vpack.c.b16 %v101, %v100
    %v104 = vpack.c.b16 %v102, %v102
    %vm106 = vcmask 162816
    %v108 = vsel %vm106, %v89, 0
    %v111 = vsel %vm69, %v104, 0
    %113 = vmatpush.bf16.msra.mxu0 0
    %114 = vmatpush.bf16.msra.mxu0 0
    %115 = vmatpush.bf16.msra.mxu0 0
    %116 = vmatpush.bf16.msra.mxu0 0
    %117 = vmatpush.bf16.msra.mxu0 0
    %118 = vmatpush.bf16.msra.mxu0 0
    %119 = vmatpush.bf16.msra.mxu0 %v111
    %120 = vmatpush.bf16.msra.mxu0 %v103
    %121 = vmatmul.bf16.gmra.mxu0 %v108
    %v122 = vpop.f32.mrf.mxu0
    %v123 = vadd.f32 %v95, %v122
    %v124 = vpop.f32.mrf.mxu0
    %125 = vdwg.mxu0
    %vm126 = vcmp.ge.f32.partialorder %v123, 0.0
    %v127 = vmul.f32 %v123, 0.01
    %v128 = vsel %vm126, %v123, %v127
    %v129 = vpack.c.bf16 %v128, %v128
    %v130 = vld [vmem:[%s5] sm:$0xf]
    %v131 = vld [vmem:[%s5 + $0x4] sm:$0xf]
    %v132 = vld [vmem:[%s5 + $0x8] sm:$0x3]
    %v133 = vld [vmem:[%s6] sm:$0x1]
    %v135 = vperm.slane %v133, 0
    %v140 = vunpack.c.l.b16 %v130
    %v141 = vunpack.c.l.b16 %v131
    %v142 = vunpack.c.l.b16 %v132
    %v143 = vpack.c.b16 %v141, %v140
    %v144 = vpack.c.b16 %v142, %v142
    %v147 = vsel %vm106, %v129, 0
    %v150 = vsel %vm69, %v144, 0
    %152 = vmatpush.bf16.msra.mxu0 0
    %153 = vmatpush.bf16.msra.mxu0 0
    %154 = vmatpush.bf16.msra.mxu0 0
    %155 = vmatpush.bf16.msra.mxu0 0
    %156 = vmatpush.bf16.msra.mxu0 0
    %157 = vmatpush.bf16.msra.mxu0 0
    %158 = vmatpush.bf16.msra.mxu0 %v150
    %159 = vmatpush.bf16.msra.mxu0 %v143
    %160 = vmatmul.bf16.gmra.mxu0 %v147
    %v161 = vpop.f32.mrf.mxu0
    %v162 = vadd.f32 %v135, %v161
    %v163 = vpop.f32.mrf.mxu0
    %164 = vdwg.mxu0
    %v165 = vtanh.pop %v162
    %v166 = vpack.c.bf16 %v165, %v165
    %v167 = vld [vmem:[%s7] sm:$0xf]
    %v168 = vld [vmem:[%s7 + $0x4] sm:$0xf]
    %v171 = vunpack.c.l.b16 %v167
    %v172 = vunpack.c.l.b16 %v168
    %v173 = vpack.c.b16 %v172, %v171
    %vm174 = vcmask 121856
    %v176 = vsel %vm174, %v166, 0
    %vm178 = vcmask 1046528
    %vm179 = vcmask 1047552
    %v180 = vsel %vm178, 4294967295, 65535
    %v181 = vsel %vm179, %v180, 0
    %v183 = vand.u32 %v173, %v181
    %185 = vmatpush.bf16.msra.mxu0 0
    %186 = vmatpush.bf16.msra.mxu0 0
    %187 = vmatpush.bf16.msra.mxu0 0
    %188 = vmatpush.bf16.msra.mxu0 0
    %189 = vmatpush.bf16.msra.mxu0 0
    %190 = vmatpush.bf16.msra.mxu0 0
    %191 = vmatpush.bf16.msra.mxu0 0
    %192 = vmatpush.bf16.msra.mxu0 %v183
    %193 = vmatmul.bf16.gmra.mxu0 %v176
    %v194 = vpop.f32.mrf.mxu0
    %v195 = vadd.f32 0.0, %v194
    %v196 = vpop.f32.mrf.mxu0
    %197 = vdwg.mxu0
    %198 = vst [vmem:[#allocation7] sm:$0xff] %v195
    // Predicated region
    $region42: #{tpu_custom_call.1} parent=1 // pred_check
      _
    $region43: #{tpu_custom_call.1} parent=1 // pred_check_branch
      %200 = sbr.rel (0) target = $region45
    $region44: #{tpu_custom_call.1} parent=1 // pred_region
      %202 = vsyncadd [#allocation4], 0
      %s204 = sshll.u32 [#allocation7], 4
      %s205 = int_to_ptr.vmem [resolvable:$true] %s204
      %s206 = sshll.u32 %s8, 4
      %s207 = int_to_ptr.hbm [resolvable:$true] %s206
      %209 = dma.vmem_to_hbm [thread:$0]  %s205, 128, %s207, [#allocation4]
    $region45: #{tpu_custom_call.1} parent=1 // pred_fallthru
      _
    // Predicated region
    $region46: #{tpu_custom_call.1} parent=1 // pred_check
      _
    $region47: #{tpu_custom_call.1} parent=1 // pred_check_branch
      %211 = sbr.rel (0) target = $region49
    $region48: #{tpu_custom_call.1} parent=1 // pred_region
      %213 = dma.done [#allocation4], 128
    $region49: #{tpu_custom_call.1} parent=1 // pred_fallthru
      _
    %214 = vsyncpa [#allocation3], 1
    %215 = vsyncpa [#allocation6], 1
    %216 = vsyncpa [#allocation4], 1

</llo_original>
